<compile_context>
chip_gen: v5e
topology: v5e:2x2
jax: 0.10.0
libtpu: 0.0.40
codegen_flags: <defaults>
</compile_context>

<pallas_src>
import jax
import jax.numpy as jnp
from jax import lax
from jax.experimental import pallas as pl
from jax.experimental.pallas import tpu as pltpu

BN_EPS = 1e-5
VMEM_LIMIT = 32 * 1024 * 1024   # explicit scoped-VMEM budget (safe on v5e/v6e/v7x)


# ----------------------------------------------------------------- kernels ---

def _make_matmul_stats_kernel(m_true, tm):
    """Phase 1: y = patches @ W (bf16 -> f32) + per-channel sum / sumsq accumulation."""

    def kernel(p_ref, w_ref, y_ref, sum_ref, sq_ref):
        i = pl.program_id(0)

        @pl.when(i == 0)
        def _():
            sum_ref[...] = jnp.zeros_like(sum_ref)
            sq_ref[...] = jnp.zeros_like(sq_ref)

        # conv == matmul on the MXU (bf16 inputs, f32 accumulation)
        y = jnp.dot(p_ref[...], w_ref[...], preferred_element_type=jnp.float32)
        y_ref[...] = y

        # exclude zero-padded rows (row >= m_true) from the batch statistics
        row = i * tm + lax.broadcasted_iota(jnp.int32, y.shape, 0)
        ym = jnp.where(row < m_true, y, 0.0)
        sum_ref[...] += jnp.sum(ym, axis=0, keepdims=True)
        sq_ref[...] += jnp.sum(ym * ym, axis=0, keepdims=True)

    return kernel


def _make_bn_relu_kernel(m_true):
    """Phase 2: BatchNorm (training-mode batch stats) + affine + ReLU, all f32."""
    inv_m = 1.0 / float(m_true)

    def kernel(y_ref, sum_ref, sq_ref, g_ref, b_ref, o_ref):
        mean = sum_ref[...] * inv_m
        var = sq_ref[...] * inv_m - mean * mean            # one-pass E[y^2] - mean^2
        scale = g_ref[...] * lax.rsqrt(var + BN_EPS)
        shift = b_ref[...] - mean * scale
        o_ref[...] = jnp.maximum(y_ref[...] * scale + shift, 0.0)

    return kernel


# ----------------------------------------------------------------- wrapper ---

def _im2col(x, k, stride, dilation, padding):
    """x: (N,C,H,W) -> (N*Ho*Wo, C*k*k), (c,kh,kw) ordering matches OIHW weights."""
    # TODO(synk): for k>1 an implicit im2col (k*k shifted matmuls accumulated
    # in-kernel from an NHWC ref) would avoid the k^2 HBM blowup; explicit form
    # kept for simplicity (the shipped config is k=1 and skips it entirely).
    N, C, H, W = x.shape
    xp = jnp.pad(x, ((0, 0), (0, 0), (padding, padding), (padding, padding)))
    Hp, Wp = xp.shape[2], xp.shape[3]
    Ho = (Hp - dilation * (k - 1) - 1) // stride + 1
    Wo = (Wp - dilation * (k - 1) - 1) // stride + 1
    cols = []
    for kh in range(k):
        for kw in range(k):
            cols.append(xp[:, :,
                           kh * dilation: kh * dilation + stride * (Ho - 1) + 1: stride,
                           kw * dilation: kw * dilation + stride * (Wo - 1) + 1: stride])
    col = jnp.stack(cols, axis=2).reshape(N, C * k * k, Ho, Wo)
    col = col.transpose(0, 2, 3, 1).reshape(N * Ho * Wo, C * k * k)
    return col, Ho, Wo


def conv_block_forward(x, weight, gamma, beta, *, stride=1, dilation=1, tm=256):
    """ConvBlock forward. x: (N,Cin,H,W) f32, weight: (Cout,Cin,k,k), gamma/beta: (Cout,)."""
    N, C, H, W = x.shape
    Cout, Cin, kh, kw = weight.shape
    assert Cin == C and kh == kw
    k = kh
    padding = (k + (k - 1) * (dilation - 1)) // 2   # same formula as the PyTorch module

    if k == 1:
        # 1x1 conv: "im2col" is only a layout change (padding is 0 by the formula).
        xs = x[:, :, ::stride, ::stride]
        Ho, Wo = xs.shape[2], xs.shape[3]
        patches = xs.transpose(0, 2, 3, 1).reshape(N * Ho * Wo, C)
    else:
        patches, Ho, Wo = _im2col(x, k, stride, dilation, padding)

    M, K = patches.shape
    wmat = weight.reshape(Cout, K).T                               # (K, Cout)

    # bf16 for the MXU; no lane-padding of K / Cout in HBM.
    patches_bf = patches.astype(jnp.bfloat16)
    wmat_bf = wmat.astype(jnp.bfloat16)
    g2 = gamma.reshape(1, Cout).astype(jnp.float32)
    b2 = beta.reshape(1, Cout).astype(jnp.float32)

    # Tile M (sublane axis must be a multiple of 8 when it is not the full dim).
    tm = min(tm, ((M + 7) // 8) * 8)
    tm = max(8, (tm // 8) * 8)
    Mp = ((M + tm - 1) // tm) * tm
    if Mp != M:
        patches_bf = jnp.pad(patches_bf, ((0, Mp - M), (0, 0)))     # rows masked in-kernel
    n_tiles = Mp // tm

    # ---- phase 1: tiled matmul + per-channel sum / sumsq accumulation --------
    y, csum, csq = pl.pallas_call(
        _make_matmul_stats_kernel(M, tm),
        out_shape=(jax.ShapeDtypeStruct((Mp, Cout), jnp.float32),
                   jax.ShapeDtypeStruct((1, Cout), jnp.float32),
                   jax.ShapeDtypeStruct((1, Cout), jnp.float32)),
        grid=(n_tiles,),
        in_specs=[pl.BlockSpec((tm, K), lambda i: (i, 0)),
                  pl.BlockSpec((K, Cout), lambda i: (0, 0))],
        out_specs=(pl.BlockSpec((tm, Cout), lambda i: (i, 0)),
                   pl.BlockSpec((1, Cout), lambda i: (0, 0)),
                   pl.BlockSpec((1, Cout), lambda i: (0, 0))),
        compiler_params=pltpu.CompilerParams(
            dimension_semantics=("arbitrary",),       # stats accumulate across M tiles
            vmem_limit_bytes=VMEM_LIMIT),
        cost_estimate=pl.CostEstimate(
            flops=2 * Mp * K * Cout,
            transcendentals=0,
            bytes_accessed=Mp * K * 2 + K * Cout * 2 + Mp * Cout * 4),
    )(patches_bf, wmat_bf)

    # ---- phase 2: normalize + affine + ReLU (parallel over M tiles) ----------
    out_rows = pl.pallas_call(
        _make_bn_relu_kernel(M),
        out_shape=jax.ShapeDtypeStruct((Mp, Cout), jnp.float32),
        grid=(n_tiles,),
        in_specs=[pl.BlockSpec((tm, Cout), lambda i: (i, 0)),
                  pl.BlockSpec((1, Cout), lambda i: (0, 0)),
                  pl.BlockSpec((1, Cout), lambda i: (0, 0)),
                  pl.BlockSpec((1, Cout), lambda i: (0, 0)),
                  pl.BlockSpec((1, Cout), lambda i: (0, 0))],
        out_specs=pl.BlockSpec((tm, Cout), lambda i: (i, 0)),
        compiler_params=pltpu.CompilerParams(
            dimension_semantics=("parallel",),
            vmem_limit_bytes=VMEM_LIMIT),
    )(y, csum, csq, g2, b2)

    # back to NCHW (PyTorch layout)
    return out_rows[:M].reshape(N, Ho, Wo, Cout).transpose(0, 3, 1, 2)


# --------------------------------------------------------------- reference ---

def _reference(x, weight, gamma, beta, *, stride=1, dilation=1, matmul_dtype=jnp.float32):
    """ConvBlock forward semantics. matmul_dtype=bf16 mirrors the kernel's MXU path."""
    k = weight.shape[2]
    padding = (k + (k - 1) * (dilation - 1)) // 2
    y = lax.conv_general_dilated(
        x.astype(matmul_dtype), weight.astype(matmul_dtype),
        window_strides=(stride, stride),
        padding=((padding, padding), (padding, padding)),
        rhs_dilation=(dilation, dilation),
        dimension_numbers=("NCHW", "OIHW", "NCHW"),
        preferred_element_type=jnp.float32)
    mean = jnp.mean(y, axis=(0, 2, 3), keepdims=True)
    var = jnp.mean(jnp.square(y - mean), axis=(0, 2, 3), keepdims=True)
    yh = (y - mean) * lax.rsqrt(var + BN_EPS)
    out = yh * gamma.reshape(1, -1, 1, 1) + beta.reshape(1, -1, 1, 1)
    return jnp.maximum(out, 0.0)


if __name__ == "__main__":
    key = jax.random.PRNGKey(0)
    kx, kw_key = jax.random.split(key)

    # ConvBlock(in_channels=4, out_channels=8) with defaults
    # (kernel_size=1, stride=1, dilation=1, bias=False).
    N, Cin, H, W = 2, 4, 16, 16
    Cout, ksize = 8, 1

    x = jax.random.normal(kx, (N, Cin, H, W), jnp.float32)
    weight = 0.1 * jax.random.normal(kw_key, (Cout, Cin, ksize, ksize), jnp.float32)
    gamma = jnp.ones((Cout,), jnp.float32)   # BatchNorm2d default affine init
    beta = jnp.zeros((Cout,), jnp.float32)
    # TODO(synk): BatchNorm running_mean/running_var buffer updates are stateful
    # side effects that do not affect this forward output; not modeled here.

    out = jax.block_until_ready(conv_block_forward(x, weight, gamma, beta))
    assert out.shape == (N, Cout, H, W)

    # tight check vs a reference that mirrors the kernel's bf16-input matmul
    ref_bf16 = _reference(x, weight, gamma, beta, matmul_dtype=jnp.bfloat16)
    assert jnp.allclose(out, ref_bf16, atol=2e-3, rtol=2e-3), "mismatch vs bf16-matmul reference"

    # loose sanity check vs the exact f32 module semantics (bf16 MXU rounding budget)
    ref_f32 = _reference(x, weight, gamma, beta)
    assert jnp.allclose(out, ref_f32, atol=5e-2, rtol=5e-2), "mismatch vs f32 reference"

    print("KERNEL_OK")
</pallas_src>

<mosaic_0001>
module attributes {stable_mosaic.version = 11 : i64} {
  func.func @kernel(%arg0: i32, %arg1: memref<256x4xbf16, #tpu.memory_space<vmem>>, %arg2: memref<4x8xbf16, #tpu.memory_space<vmem>>, %arg3: memref<256x8xf32, #tpu.memory_space<vmem>>, %arg4: memref<1x8xf32, #tpu.memory_space<vmem>>, %arg5: memref<1x8xf32, #tpu.memory_space<vmem>>) attributes {dimension_semantics = [#tpu.dimension_semantics<arbitrary>], iteration_bounds = array<i64: 2>, scalar_prefetch = 0 : i64, scratch_operands = 0 : i64, tpu.core_type = #tpu.core_type<tc>, window_params = [{transform_indices = @transform_0, window_bounds = array<i64: 256, 4>}, {pipeline_mode = #tpu.pipeline_mode<synchronous>, transform_indices = @transform_1, window_bounds = array<i64: 4, 8>}, {transform_indices = @transform_2, window_bounds = array<i64: 256, 8>}, {pipeline_mode = #tpu.pipeline_mode<synchronous>, transform_indices = @transform_3, window_bounds = array<i64: 1, 8>}, {pipeline_mode = #tpu.pipeline_mode<synchronous>, transform_indices = @transform_4, window_bounds = array<i64: 1, 8>}]} {
    %c0_i32 = arith.constant 0 : i32
    %0 = arith.cmpi eq, %arg0, %c0_i32 : i32
    %1 = arith.extui %0 : i1 to i32
    %c0_i32_0 = arith.constant 0 : i32
    %2 = arith.cmpi ne, %1, %c0_i32_0 : i32
    scf.if %2 {
      %cst_17 = arith.constant 0.000000e+00 : f32
      %26 = vector.broadcast %cst_17 : f32 to vector<1x8xf32>
      %c0_18 = arith.constant 0 : index
      %c0_19 = arith.constant 0 : index
      %27 = vector.load %arg4[%c0_18, %c0_19] : memref<1x8xf32, #tpu.memory_space<vmem>>, vector<1x8xf32>
      tpu.vector_store %arg4[%c0_18, %c0_19], %26 {strides = array<i32>} : memref<1x8xf32, #tpu.memory_space<vmem>>, vector<1x8xf32>,
      %cst_20 = arith.constant 0.000000e+00 : f32
      %28 = vector.broadcast %cst_20 : f32 to vector<1x8xf32>
      %c0_21 = arith.constant 0 : index
      %c0_22 = arith.constant 0 : index
      %29 = vector.load %arg5[%c0_21, %c0_22] : memref<1x8xf32, #tpu.memory_space<vmem>>, vector<1x8xf32>
      tpu.vector_store %arg5[%c0_21, %c0_22], %28 {strides = array<i32>} : memref<1x8xf32, #tpu.memory_space<vmem>>, vector<1x8xf32>,
    } else {
    }
    %c0 = arith.constant 0 : index
    %c0_1 = arith.constant 0 : index
    %3 = vector.load %arg1[%c0, %c0_1] : memref<256x4xbf16, #tpu.memory_space<vmem>>, vector<256x4xbf16>
    %c0_2 = arith.constant 0 : index
    %c0_3 = arith.constant 0 : index
    %4 = vector.load %arg2[%c0_2, %c0_3] : memref<4x8xbf16, #tpu.memory_space<vmem>>, vector<4x8xbf16>
    %cst = arith.constant dense<0.000000e+00> : vector<256x8xf32>
    %5 = tpu.matmul %3, %4, %cst {dimension_numbers = #tpu.dot_dimension_numbers<[1], [0], [0], [1], [0, 0, 1, 1], [], []>} : vector<256x4xbf16>, vector<4x8xbf16>, vector<256x8xf32> -> vector<256x8xf32>
    %c0_4 = arith.constant 0 : index
    %c0_5 = arith.constant 0 : index
    %6 = vector.load %arg3[%c0_4, %c0_5] : memref<256x8xf32, #tpu.memory_space<vmem>>, vector<256x8xf32>
    tpu.vector_store %arg3[%c0_4, %c0_5], %5 {strides = array<i32>} : memref<256x8xf32, #tpu.memory_space<vmem>>, vector<256x8xf32>,
    %c256_i32 = arith.constant 256 : i32
    %7 = arith.muli %arg0, %c256_i32 : i32
    %8 = tpu.iota {dimensions = array<i32: 0>} : vector<256x8xi32>
    %9 = vector.broadcast %7 : i32 to vector<256x8xi32>
    %10 = arith.addi %9, %8 : vector<256x8xi32>
    %c512_i32 = arith.constant 512 : i32
    %11 = vector.broadcast %c512_i32 : i32 to vector<256x8xi32>
    %12 = arith.cmpi slt, %10, %11 : vector<256x8xi32>
    %cst_6 = arith.constant 0.000000e+00 : f32
    %13 = vector.broadcast %cst_6 : f32 to vector<256x8xf32>
    %14 = arith.select %12, %5, %13 : vector<256x8xi1>, vector<256x8xf32>
    %c0_7 = arith.constant 0 : index
    %c0_8 = arith.constant 0 : index
    %15 = vector.load %arg4[%c0_7, %c0_8] : memref<1x8xf32, #tpu.memory_space<vmem>>, vector<1x8xf32>
    %cst_9 = arith.constant dense<0.000000e+00> : vector<8xf32>
    %16 = vector.multi_reduction <add>, %14, %cst_9 [0] : vector<256x8xf32> to vector<8xf32>
    %17 = vector.shape_cast %16 : vector<8xf32> to vector<1x8xf32>
    %18 = arith.addf %15, %17 : vector<1x8xf32>
    %c0_10 = arith.constant 0 : index
    %c0_11 = arith.constant 0 : index
    %19 = vector.load %arg4[%c0_10, %c0_11] : memref<1x8xf32, #tpu.memory_space<vmem>>, vector<1x8xf32>
    tpu.vector_store %arg4[%c0_10, %c0_11], %18 {strides = array<i32>} : memref<1x8xf32, #tpu.memory_space<vmem>>, vector<1x8xf32>,
    %c0_12 = arith.constant 0 : index
    %c0_13 = arith.constant 0 : index
    %20 = vector.load %arg5[%c0_12, %c0_13] : memref<1x8xf32, #tpu.memory_space<vmem>>, vector<1x8xf32>
    %21 = arith.mulf %14, %14 : vector<256x8xf32>
    %cst_14 = arith.constant dense<0.000000e+00> : vector<8xf32>
    %22 = vector.multi_reduction <add>, %21, %cst_14 [0] : vector<256x8xf32> to vector<8xf32>
    %23 = vector.shape_cast %22 : vector<8xf32> to vector<1x8xf32>
    %24 = arith.addf %20, %23 : vector<1x8xf32>
    %c0_15 = arith.constant 0 : index
    %c0_16 = arith.constant 0 : index
    %25 = vector.load %arg5[%c0_15, %c0_16] : memref<1x8xf32, #tpu.memory_space<vmem>>, vector<1x8xf32>
    tpu.vector_store %arg5[%c0_15, %c0_16], %24 {strides = array<i32>} : memref<1x8xf32, #tpu.memory_space<vmem>>, vector<1x8xf32>,
    return
  }
  func.func @transform_0(%arg0: i32) -> (i32, i32) {
    %c0_i32 = arith.constant 0 : i32
    %c0_i32_0 = arith.constant 0 : i32
    return %arg0, %c0_i32 : i32, i32
  }
  func.func @transform_1(%arg0: i32) -> (i32, i32) {
    %c0_i32 = arith.constant 0 : i32
    %c0_i32_0 = arith.constant 0 : i32
    %c0_i32_1 = arith.constant 0 : i32
    return %c0_i32, %c0_i32_0 : i32, i32
  }
  func.func @transform_2(%arg0: i32) -> (i32, i32) {
    %c0_i32 = arith.constant 0 : i32
    %c0_i32_0 = arith.constant 0 : i32
    return %arg0, %c0_i32 : i32, i32
  }
  func.func @transform_3(%arg0: i32) -> (i32, i32) {
    %c0_i32 = arith.constant 0 : i32
    %c0_i32_0 = arith.constant 0 : i32
    %c0_i32_1 = arith.constant 0 : i32
    return %c0_i32, %c0_i32_0 : i32, i32
  }
  func.func @transform_4(%arg0: i32) -> (i32, i32) {
    %c0_i32 = arith.constant 0 : i32
    %c0_i32_0 = arith.constant 0 : i32
    %c0_i32_1 = arith.constant 0 : i32
    return %c0_i32, %c0_i32_0 : i32, i32
  }
}

</mosaic_0001>

<llo_original>
// kernel: tpu_custom_call.1
$region0: #{tpu_custom_call.1}
  #allocation0 [shape = 'u32[]', space=smem, size = 0x4, offset = 0x4, fixed_abs, tag = 'smem constant byte address 0x4 - core index']
  #allocation1 [shape = 'u32[72,128]{1,0:T(1,128)}', space=vmem, size = 0x9000, scoped, tag = 'internal scratch']
  %s0 = inlined_call_operand.vmem [shape: bf16[512,4], index: 0, kind: input, shape index: {}]
  %s1 = inlined_call_operand.vmem [shape: bf16[4,8], index: 1, kind: input, shape index: {}]
  %s2 = inlined_call_operand.vmem [shape: f32[512,8], index: 2, kind: output, shape index: {0}]
  %s3 = inlined_call_operand.hbm [shape: f32[1,8], index: 3, kind: output, shape index: {1}]
  %s4 = inlined_call_operand.hbm [shape: f32[1,8], index: 4, kind: output, shape index: {2}]
  %5 = xla_tuple %s2, %s3, %s4
  %s6 = sld [smem:[#allocation0]]
  $region61: #{tpu_custom_call.1} parent=0
    _
  %s8 = ssub.s32 1, %s6
  %s9 = scalar_select 0, %s8, %s6
  $region1: #{tpu_custom_call.1} parent=0
    #allocation2 [shape = 'u8[512]{0}', space=vmem, size = 0x400, scoped, tag = 'output window, operand 1, single buffered']
    #allocation3 [shape = 's32[2]{0}', space=sflag, size = 0x8, scoped, tag = 'scoped memory for tpu_custom_call.1']
    #allocation4 [shape = 'u8[512]{0}', space=vmem, size = 0x400, scoped, tag = 'output window, operand 2, single buffered']
    #allocation5 [shape = 's32[1]{0}', space=sflag, size = 0x4, scoped, tag = 'scoped memory for tpu_custom_call.1']
    %10 = vsyncpa [#allocation3], 0
    %11 = vsyncpa [#allocation5], 0
    loop: start=0, step=1, limit=4
    $region2: #{tpu_custom_call.1} parent=1 // loop_pre_header
      _
    $region3: #{tpu_custom_call.1} parent=1 // loop_header
      %s13 = sphi 0, %s17
      %p14 = scmp.ge.s32.totalorder %s13, 4
      %s23 = sphi 0, %s25
      %s26 = sphi 0, %s23
      %s27 = sphi 0, %s26
      %s43 = sphi 0, %s27
      %s47 = sphi 0, %s47
      %s49 = sphi 0, %s47
      %s50 = sphi 0, %s49
      %s64 = sphi 0, %s50
      %s70 = sphi 0, %s72
      %s73 = sphi 0, %s70
      %s74 = sphi 0, %s73
      %s90 = sphi 0, %s74
      %s94 = sphi 0, %s94
      %s96 = sphi 0, %s94
      %s97 = sphi 0, %s96
      %s111 = sphi 0, %s97
      %s115 = sphi 0, %s115
      %s117 = sphi 0, %s115
      %s118 = sphi 0, %s117
      %s132 = sphi 0, %s118
    $region4: #{tpu_custom_call.1} parent=1 // loop_header_branch
      %16 = sbr.rel (%p14) target = $region8
    $region5: #{tpu_custom_call.1} parent=1 // loop_body
      %s18 = ssub.s32 %s13, 1
      %s19 = ssub.s32 %s13, 2
      %s20 = sadd.s32 %s13, 1
      %s21 = ssub.s32 %s13, %s20
      %p22 = scmp.eq.s32.totalorder %s21, 0
      %s24 = sadd.s32 %s23, 1
      %s25 = scalar_select %p22, %s23, %s24
      %p28 = pneg %p22
      %p29 = scmp.eq.s32.totalorder %s13, 1
      %p30 = por %p28, %p29
      %p31 = scmp.ne.s32.totalorder %s23, %s26
      %p32 = scmp.eq.s32.totalorder %s13, 0
      %p33 = por %p31, %p32
      %p34 = scmp.ne.s32.totalorder %s23, %s26
      %p35 = scmp.eq.s32.totalorder %s18, 1
      %p36 = por %p34, %p35
      %p37 = scmp.ne.s32.totalorder %s26, %s27
      %p38 = scmp.eq.s32.totalorder %s18, 0
      %p39 = por %p37, %p38
      %p40 = scmp.ne.s32.totalorder %s26, %s27
      %p41 = scmp.eq.s32.totalorder %s19, 1
      %p42 = por %p40, %p41
      %p44 = scmp.ne.s32.totalorder %s27, %s43
      %p45 = scmp.eq.s32.totalorder %s19, 0
      %p46 = por %p44, %p45
      %s48 = sadd.s32 %s47, 1
      %p51 = scmp.eq.s32.totalorder %s13, 1
      %p52 = scmp.ne.s32.totalorder %s47, %s49
      %p53 = scmp.eq.s32.totalorder %s13, 0
      %p54 = por %p52, %p53
      %p55 = scmp.ne.s32.totalorder %s47, %s49
      %p56 = scmp.eq.s32.totalorder %s18, 1
      %p57 = por %p55, %p56
      %p58 = scmp.ne.s32.totalorder %s49, %s50
      %p59 = scmp.eq.s32.totalorder %s18, 0
      %p60 = por %p58, %p59
      %p61 = scmp.ne.s32.totalorder %s49, %s50
      %p62 = scmp.eq.s32.totalorder %s19, 1
      %p63 = por %p61, %p62
      %p65 = scmp.ne.s32.totalorder %s50, %s64
      %p66 = scmp.eq.s32.totalorder %s19, 0
      %p67 = por %p65, %p66
      %s68 = ssub.s32 %s13, %s20
      %p69 = scmp.eq.s32.totalorder %s68, 0
      %s71 = sadd.s32 %s70, 1
      %s72 = scalar_select %p69, %s70, %s71
      %p75 = pneg %p69
      %p76 = scmp.eq.s32.totalorder %s13, 1
      %p77 = por %p75, %p76
      %p78 = scmp.ne.s32.totalorder %s70, %s73
      %p79 = scmp.eq.s32.totalorder %s13, 0
      %p80 = por %p78, %p79
      %p81 = scmp.ne.s32.totalorder %s70, %s73
      %p82 = scmp.eq.s32.totalorder %s18, 1
      %p83 = por %p81, %p82
      %p84 = scmp.ne.s32.totalorder %s73, %s74
      %p85 = scmp.eq.s32.totalorder %s18, 0
      %p86 = por %p84, %p85
      %p87 = scmp.ne.s32.totalorder %s73, %s74
      %p88 = scmp.eq.s32.totalorder %s19, 1
      %p89 = por %p87, %p88
      %p91 = scmp.ne.s32.totalorder %s74, %s90
      %p92 = scmp.eq.s32.totalorder %s19, 0
      %p93 = por %p91, %p92
      %s95 = sadd.s32 %s94, 1
      %p98 = scmp.eq.s32.totalorder %s13, 1
      %p99 = scmp.ne.s32.totalorder %s94, %s96
      %p100 = scmp.eq.s32.totalorder %s13, 0
      %p101 = por %p99, %p100
      %p102 = scmp.ne.s32.totalorder %s94, %s96
      %p103 = scmp.eq.s32.totalorder %s18, 1
      %p104 = por %p102, %p103
      %p105 = scmp.ne.s32.totalorder %s96, %s97
      %p106 = scmp.eq.s32.totalorder %s18, 0
      %p107 = por %p105, %p106
      %p108 = scmp.ne.s32.totalorder %s96, %s97
      %p109 = scmp.eq.s32.totalorder %s19, 1
      %p110 = por %p108, %p109
      %p112 = scmp.ne.s32.totalorder %s97, %s111
      %p113 = scmp.eq.s32.totalorder %s19, 0
      %p114 = por %p112, %p113
      %s116 = sadd.s32 %s115, 1
      %p119 = scmp.eq.s32.totalorder %s13, 1
      %p120 = scmp.ne.s32.totalorder %s115, %s117
      %p121 = scmp.eq.s32.totalorder %s13, 0
      %p122 = por %p120, %p121
      %p123 = scmp.ne.s32.totalorder %s115, %s117
      %p124 = scmp.eq.s32.totalorder %s18, 1
      %p125 = por %p123, %p124
      %p126 = scmp.ne.s32.totalorder %s117, %s118
      %p127 = scmp.eq.s32.totalorder %s18, 0
      %p128 = por %p126, %p127
      %p129 = scmp.ne.s32.totalorder %s117, %s118
      %p130 = scmp.eq.s32.totalorder %s19, 1
      %p131 = por %p129, %p130
      %p133 = scmp.ne.s32.totalorder %s118, %s132
      %p134 = scmp.eq.s32.totalorder %s19, 0
      %p135 = por %p133, %p134
      %p136 = scmp.le.s32.totalorder 1, %s13
      %p137 = scmp.lt.s32.totalorder %s13, 3
      %p138 = pnand %p136, %p137
      %p139 = pneg %p138
      // Predicated region
      $region9: #{tpu_custom_call.1} parent=5 // pred_check
        _
      $region10: #{tpu_custom_call.1} parent=5 // pred_check_branch
        %141 = sbr.rel (%p138) target = $region12
      $region11: #{tpu_custom_call.1} parent=5 // pred_region
        %s142 = ssub.s32 %s13, 1
        // Predicated region
        $region13: #{tpu_custom_call.1} parent=11 // pred_check
          %p143 = pneg %p60
        $region14: #{tpu_custom_call.1} parent=11 // pred_check_branch
          %145 = sbr.rel (%p143) target = $region16
        $region15: #{tpu_custom_call.1} parent=11 // pred_region
          _
        $region16: #{tpu_custom_call.1} parent=11 // pred_fallthru
          _
      $region12: #{tpu_custom_call.1} parent=5 // pred_fallthru
        _
      %p146 = scmp.lt.s32.totalorder %s13, 2
      // Predicated region
      $region17: #{tpu_custom_call.1} parent=5 // pred_check
        %p147 = pneg %p146
      $region18: #{tpu_custom_call.1} parent=5 // pred_check_branch
        %149 = sbr.rel (%p147) target = $region20
      $region19: #{tpu_custom_call.1} parent=5 // pred_region
        // Predicated region
        $region21: #{tpu_custom_call.1} parent=19 // pred_check
          %p150 = pneg %p33
        $region22: #{tpu_custom_call.1} parent=19 // pred_check_branch
          %152 = sbr.rel (%p150) target = $region24
        $region23: #{tpu_custom_call.1} parent=19 // pred_region
          %s153 = smul.u32 32, %s13
          %p154 = scmp.lt.s32.totalorder %s153, 63
          %s155 = scalar_select %p154, %s153, 63
          %s156 = smul.addr %s155, 4
          %s157 = scalar_lea.vmem %s0, %s156
          %s158 = smul.u32 32, %s13
        $region24: #{tpu_custom_call.1} parent=19 // pred_fallthru
          _
      $region20: #{tpu_custom_call.1} parent=5 // pred_fallthru
        _
      %p159 = scmp.le.s32.totalorder 1, %s13
      %p160 = scmp.lt.s32.totalorder %s13, 3
      %p161 = pnand %p159, %p160
      %p162 = pneg %p161
      // Predicated region
      $region25: #{tpu_custom_call.1} parent=5 // pred_check
        _
      $region26: #{tpu_custom_call.1} parent=5 // pred_check_branch
        %164 = sbr.rel (%p161) target = $region28
      $region27: #{tpu_custom_call.1} parent=5 // pred_region
        %s165 = ssub.s32 %s13, 1
        %s166 = smul.u32 32, %s18
        %p167 = scmp.lt.s32.totalorder %s166, 63
        %s168 = scalar_select %p167, %s166, 63
        %s169 = smul.addr %s168, 4
        %s170 = scalar_lea.vmem %s0, %s169
        %p171 = pneg %p39
        %p172 = pneg %p36
        %p173 = pneg %p60
        %p174 = pneg %p57
        %p175 = pneg %p86
        %p176 = pneg %p83
        %s177 = smul.u32 32, %s18
        %p178 = scmp.lt.s32.totalorder %s177, 63
        %s179 = scalar_select %p178, %s177, 63
        %s180 = smul.addr %s179, 8
        %s181 = scalar_lea.vmem %s2, %s180
        %p182 = pneg %p107
        %p183 = pneg %p104
        %p184 = pneg %p128
        %p185 = pneg %p125
        %s186 = smul.u32 32, %s18
        %p187 = scmp.lt.s32.totalorder %s186, 63
        %s188 = scalar_select %p187, %s186, 63
        %s189 = smul.addr %s188, 4
        %s190 = scalar_lea.vmem %s0, %s189
        %s191 = smul.u32 32, %s18
        %s192 = smul.u32 32, %s18
        %p193 = scmp.lt.s32.totalorder %s192, 63
        %s194 = scalar_select %p193, %s192, 63
        %s195 = smul.addr %s194, 8
        %s196 = scalar_lea.vmem %s2, %s195
        %s197 = smul.u32 32, %s18
        %p199 = scmp.eq.s32.totalorder %s18, 0
        // Predicated region
        $region29: #{tpu_custom_call.1} parent=27 // pred_check
          %p200 = pneg %p199
        $region30: #{tpu_custom_call.1} parent=27 // pred_check_branch
          %202 = sbr.rel (%p200) target = $region32
        $region31: #{tpu_custom_call.1} parent=27 // pred_region
          %vm203 = vcmask 57344
          %204 = vst.msk [vmem:[#allocation2] sm:$0x1] %vm203, 0.0
          %205 = vst.msk [vmem:[#allocation4] sm:$0x1] %vm203, 0.0
        $region32: #{tpu_custom_call.1} parent=27 // pred_fallthru
          _
        %v206 = vld [vmem:[%s190] sm:$0xf]
        %v207 = vld [vmem:[%s190 + $0x4] sm:$0xf]
        %v208 = vld [vmem:[%s190 + $0x8] sm:$0xf]
        %v209 = vld [vmem:[%s190 + $0xc] sm:$0xf]
        %v210 = vld [vmem:[%s190 + $0x10] sm:$0xf]
        %v211 = vld [vmem:[%s190 + $0x14] sm:$0xf]
        %v212 = vld [vmem:[%s190 + $0x18] sm:$0xf]
        %v213 = vld [vmem:[%s190 + $0x1c] sm:$0xf]
        %v214 = vld [vmem:[%s190 + $0x20] sm:$0xf]
        %v215 = vld [vmem:[%s190 + $0x24] sm:$0xf]
        %v216 = vld [vmem:[%s190 + $0x28] sm:$0xf]
        %v217 = vld [vmem:[%s190 + $0x2c] sm:$0xf]
        %v218 = vld [vmem:[%s190 + $0x30] sm:$0xf]
        %v219 = vld [vmem:[%s190 + $0x34] sm:$0xf]
        %v220 = vld [vmem:[%s190 + $0x38] sm:$0xf]
        %v221 = vld [vmem:[%s190 + $0x3c] sm:$0xf]
        %v222 = vld [vmem:[%s190 + $0x40] sm:$0xf]
        %v223 = vld [vmem:[%s190 + $0x44] sm:$0xf]
        %v224 = vld [vmem:[%s190 + $0x48] sm:$0xf]
        %v225 = vld [vmem:[%s190 + $0x4c] sm:$0xf]
        %v226 = vld [vmem:[%s190 + $0x50] sm:$0xf]
        %v227 = vld [vmem:[%s190 + $0x54] sm:$0xf]
        %v228 = vld [vmem:[%s190 + $0x58] sm:$0xf]
        %v229 = vld [vmem:[%s190 + $0x5c] sm:$0xf]
        %v230 = vld [vmem:[%s190 + $0x60] sm:$0xf]
        %v231 = vld [vmem:[%s190 + $0x64] sm:$0xf]
        %v232 = vld [vmem:[%s190 + $0x68] sm:$0xf]
        %v233 = vld [vmem:[%s190 + $0x6c] sm:$0xf]
        %v234 = vld [vmem:[%s190 + $0x70] sm:$0xf]
        %v235 = vld [vmem:[%s190 + $0x74] sm:$0xf]
        %v236 = vld [vmem:[%s190 + $0x78] sm:$0xf]
        %v237 = vld [vmem:[%s190 + $0x7c] sm:$0xf]
        %v238 = vld [vmem:[%s1] sm:$0x3]
        %v271 = vunpack.c.l.b16 %v206
        %v272 = vunpack.c.l.b16 %v207
        %v273 = vunpack.c.l.b16 %v208
        %v274 = vunpack.c.l.b16 %v209
        %v275 = vunpack.c.l.b16 %v210
        %v276 = vunpack.c.l.b16 %v211
        %v277 = vunpack.c.l.b16 %v212
        %v278 = vunpack.c.l.b16 %v213
        %v279 = vunpack.c.l.b16 %v214
        %v280 = vunpack.c.l.b16 %v215
        %v281 = vunpack.c.l.b16 %v216
        %v282 = vunpack.c.l.b16 %v217
        %v283 = vunpack.c.l.b16 %v218
        %v284 = vunpack.c.l.b16 %v219
        %v285 = vunpack.c.l.b16 %v220
        %v286 = vunpack.c.l.b16 %v221
        %v287 = vunpack.c.l.b16 %v222
        %v288 = vunpack.c.l.b16 %v223
        %v289 = vunpack.c.l.b16 %v224
        %v290 = vunpack.c.l.b16 %v225
        %v291 = vunpack.c.l.b16 %v226
        %v292 = vunpack.c.l.b16 %v227
        %v293 = vunpack.c.l.b16 %v228
        %v294 = vunpack.c.l.b16 %v229
        %v295 = vunpack.c.l.b16 %v230
        %v296 = vunpack.c.l.b16 %v231
        %v297 = vunpack.c.l.b16 %v232
        %v298 = vunpack.c.l.b16 %v233
        %v299 = vunpack.c.l.b16 %v234
        %v300 = vunpack.c.l.b16 %v235
        %v301 = vunpack.c.l.b16 %v236
        %v302 = vunpack.c.l.b16 %v237
        %v303 = vpack.c.b16 %v272, %v271
        %v304 = vpack.c.b16 %v274, %v273
        %v305 = vpack.c.b16 %v276, %v275
        %v306 = vpack.c.b16 %v278, %v277
        %v307 = vpack.c.b16 %v280, %v279
        %v308 = vpack.c.b16 %v282, %v281
        %v309 = vpack.c.b16 %v284, %v283
        %v310 = vpack.c.b16 %v286, %v285
        %v311 = vpack.c.b16 %v288, %v287
        %v312 = vpack.c.b16 %v290, %v289
        %v313 = vpack.c.b16 %v292, %v291
        %v314 = vpack.c.b16 %v294, %v293
        %v315 = vpack.c.b16 %v296, %v295
        %v316 = vpack.c.b16 %v298, %v297
        %v317 = vpack.c.b16 %v300, %v299
        %v318 = vpack.c.b16 %v302, %v301
        %vm319 = vcmask 31744
        %v321 = vsel %vm319, %v303, 0
        %v324 = vsel %vm319, %v304, 0
        %v327 = vsel %vm319, %v305, 0
        %v330 = vsel %vm319, %v306, 0
        %v333 = vsel %vm319, %v307, 0
        %v336 = vsel %vm319, %v308, 0
        %v339 = vsel %vm319, %v309, 0
        %v342 = vsel %vm319, %v310, 0
        %v345 = vsel %vm319, %v311, 0
        %v348 = vsel %vm319, %v312, 0
        %v351 = vsel %vm319, %v313, 0
        %v354 = vsel %vm319, %v314, 0
        %v357 = vsel %vm319, %v315, 0
        %v360 = vsel %vm319, %v316, 0
        %v363 = vsel %vm319, %v317, 0
        %v366 = vsel %vm319, %v318, 0
        %vm368 = vcmask 1041408
        %v370 = vsel %vm368, %v238, 0
        %372 = vmatpush.bf16.msra.mxu0 0
        %373 = vmatpush.bf16.msra.mxu0 0
        %374 = vmatpush.bf16.msra.mxu0 0
        %375 = vmatpush.bf16.msra.mxu0 0
        %376 = vmatpush.bf16.msra.mxu0 0
        %377 = vmatpush.bf16.msra.mxu0 0
        %378 = vmatpush.bf16.msra.mxu0 0
        %379 = vmatpush.bf16.msra.mxu0 %v370
        %380 = vmatmul.bf16.gmra.mxu0 %v321
        %v381 = vpop.f32.mrf.mxu0
        %v382 = vadd.f32 0.0, %v381
        %v383 = vpop.f32.mrf.mxu0
        %v384 = vadd.f32 0.0, %v383
        %385 = vmatmul.bf16.gmra.mxu0 %v324
        %v386 = vpop.f32.mrf.mxu0
        %v387 = vadd.f32 0.0, %v386
        %v388 = vpop.f32.mrf.mxu0
        %v389 = vadd.f32 0.0, %v388
        %390 = vmatmul.bf16.gmra.mxu0 %v327
        %v391 = vpop.f32.mrf.mxu0
        %v392 = vadd.f32 0.0, %v391
        %v393 = vpop.f32.mrf.mxu0
        %v394 = vadd.f32 0.0, %v393
        %395 = vmatmul.bf16.gmra.mxu0 %v330
        %v396 = vpop.f32.mrf.mxu0
        %v397 = vadd.f32 0.0, %v396
        %v398 = vpop.f32.mrf.mxu0
        %v399 = vadd.f32 0.0, %v398
        %400 = vmatmul.bf16.gmra.mxu0 %v333
        %v401 = vpop.f32.mrf.mxu0
        %v402 = vadd.f32 0.0, %v401
        %v403 = vpop.f32.mrf.mxu0
        %v404 = vadd.f32 0.0, %v403
        %405 = vmatmul.bf16.gmra.mxu0 %v336
        %v406 = vpop.f32.mrf.mxu0
        %v407 = vadd.f32 0.0, %v406
        %v408 = vpop.f32.mrf.mxu0
        %v409 = vadd.f32 0.0, %v408
        %410 = vmatmul.bf16.gmra.mxu0 %v339
        %v411 = vpop.f32.mrf.mxu0
        %v412 = vadd.f32 0.0, %v411
        %v413 = vpop.f32.mrf.mxu0
        %v414 = vadd.f32 0.0, %v413
        %415 = vmatmul.bf16.gmra.mxu0 %v342
        %v416 = vpop.f32.mrf.mxu0
        %v417 = vadd.f32 0.0, %v416
        %v418 = vpop.f32.mrf.mxu0
        %v419 = vadd.f32 0.0, %v418
        %420 = vmatmul.bf16.gmra.mxu0 %v345
        %v421 = vpop.f32.mrf.mxu0
        %v422 = vadd.f32 0.0, %v421
        %v423 = vpop.f32.mrf.mxu0
        %v424 = vadd.f32 0.0, %v423
        %425 = vmatmul.bf16.gmra.mxu0 %v348
        %v426 = vpop.f32.mrf.mxu0
        %v427 = vadd.f32 0.0, %v426
        %v428 = vpop.f32.mrf.mxu0
        %v429 = vadd.f32 0.0, %v428
        %430 = vmatmul.bf16.gmra.mxu0 %v351
        %v431 = vpop.f32.mrf.mxu0
        %v432 = vadd.f32 0.0, %v431
        %v433 = vpop.f32.mrf.mxu0
        %v434 = vadd.f32 0.0, %v433
        %435 = vmatmul.bf16.gmra.mxu0 %v354
        %v436 = vpop.f32.mrf.mxu0
        %v437 = vadd.f32 0.0, %v436
        %v438 = vpop.f32.mrf.mxu0
        %v439 = vadd.f32 0.0, %v438
        %440 = vmatmul.bf16.gmra.mxu0 %v357
        %v441 = vpop.f32.mrf.mxu0
        %v442 = vadd.f32 0.0, %v441
        %v443 = vpop.f32.mrf.mxu0
        %v444 = vadd.f32 0.0, %v443
        %445 = vmatmul.bf16.gmra.mxu0 %v360
        %v446 = vpop.f32.mrf.mxu0
        %v447 = vadd.f32 0.0, %v446
        %v448 = vpop.f32.mrf.mxu0
        %v449 = vadd.f32 0.0, %v448
        %450 = vmatmul.bf16.gmra.mxu0 %v363
        %v451 = vpop.f32.mrf.mxu0
        %v452 = vadd.f32 0.0, %v451
        %v453 = vpop.f32.mrf.mxu0
        %v454 = vadd.f32 0.0, %v453
        %455 = vmatmul.bf16.gmra.mxu0 %v366
        %v456 = vpop.f32.mrf.mxu0
        %v457 = vadd.f32 0.0, %v456
        %v458 = vpop.f32.mrf.mxu0
        %v459 = vadd.f32 0.0, %v458
        %460 = vdwg.mxu0
        %vm461 = vcmask 64512
        %462 = vst.msk [vmem:[%s196] sm:$0xff] %vm461, %v382
        %463 = vst.msk [vmem:[%s196 + $0x8] sm:$0xff] %vm461, %v384
        %464 = vst.msk [vmem:[%s196 + $0x10] sm:$0xff] %vm461, %v387
        %465 = vst.msk [vmem:[%s196 + $0x18] sm:$0xff] %vm461, %v389
        %466 = vst.msk [vmem:[%s196 + $0x20] sm:$0xff] %vm461, %v392
        %467 = vst.msk [vmem:[%s196 + $0x28] sm:$0xff] %vm461, %v394
        %468 = vst.msk [vmem:[%s196 + $0x30] sm:$0xff] %vm461, %v397
        %469 = vst.msk [vmem:[%s196 + $0x38] sm:$0xff] %vm461, %v399
        %470 = vst.msk [vmem:[%s196 + $0x40] sm:$0xff] %vm461, %v402
        %471 = vst.msk [vmem:[%s196 + $0x48] sm:$0xff] %vm461, %v404
        %472 = vst.msk [vmem:[%s196 + $0x50] sm:$0xff] %vm461, %v407
        %473 = vst.msk [vmem:[%s196 + $0x58] sm:$0xff] %vm461, %v409
        %474 = vst.msk [vmem:[%s196 + $0x60] sm:$0xff] %vm461, %v412
        %475 = vst.msk [vmem:[%s196 + $0x68] sm:$0xff] %vm461, %v414
        %476 = vst.msk [vmem:[%s196 + $0x70] sm:$0xff] %vm461, %v417
        %477 = vst.msk [vmem:[%s196 + $0x78] sm:$0xff] %vm461, %v419
        %478 = vst.msk [vmem:[%s196 + $0x80] sm:$0xff] %vm461, %v422
        %479 = vst.msk [vmem:[%s196 + $0x88] sm:$0xff] %vm461, %v424
        %480 = vst.msk [vmem:[%s196 + $0x90] sm:$0xff] %vm461, %v427
        %481 = vst.msk [vmem:[%s196 + $0x98] sm:$0xff] %vm461, %v429
        %482 = vst.msk [vmem:[%s196 + $0xa0] sm:$0xff] %vm461, %v432
        %483 = vst.msk [vmem:[%s196 + $0xa8] sm:$0xff] %vm461, %v434
        %484 = vst.msk [vmem:[%s196 + $0xb0] sm:$0xff] %vm461, %v437
        %485 = vst.msk [vmem:[%s196 + $0xb8] sm:$0xff] %vm461, %v439
        %486 = vst.msk [vmem:[%s196 + $0xc0] sm:$0xff] %vm461, %v442
        %487 = vst.msk [vmem:[%s196 + $0xc8] sm:$0xff] %vm461, %v444
        %488 = vst.msk [vmem:[%s196 + $0xd0] sm:$0xff] %vm461, %v447
        %489 = vst.msk [vmem:[%s196 + $0xd8] sm:$0xff] %vm461, %v449
        %490 = vst.msk [vmem:[%s196 + $0xe0] sm:$0xff] %vm461, %v452
        %491 = vst.msk [vmem:[%s196 + $0xe8] sm:$0xff] %vm461, %v454
        %492 = vst.msk [vmem:[%s196 + $0xf0] sm:$0xff] %vm461, %v457
        %493 = vst.msk [vmem:[%s196 + $0xf8] sm:$0xff] %vm461, %v459
        %s494 = smul.u32 %s18, 256
        %v495 = vlaneseq
        %v496 = vshrl.u32 %v495, 7
        %v497 = vadd.s32 %v496, 8
        %v498 = vadd.s32 %v496, 16
        %v499 = vadd.s32 %v496, 24
        %v500 = vadd.s32 %v496, 32
        %v501 = vadd.s32 %v496, 40
        %v502 = vadd.s32 %v496, 48
        %v503 = vadd.s32 %v496, 56
        %v504 = vadd.s32 %v496, 64
        %v505 = vadd.s32 %v496, 72
        %v506 = vadd.s32 %v496, 80
        %v507 = vadd.s32 %v496, 88
        %v508 = vadd.s32 %v496, 96
        %v509 = vadd.s32 %v496, 104
        %v510 = vadd.s32 %v496, 112
        %v511 = vadd.s32 %v496, 120
        %v512 = vadd.s32 %v496, 128
        %v513 = vadd.s32 %v496, 136
        %v514 = vadd.s32 %v496, 144
        %v515 = vadd.s32 %v496, 152
        %v516 = vadd.s32 %v496, 160
        %v517 = vadd.s32 %v496, 168
        %v518 = vadd.s32 %v496, 176
        %v519 = vadd.s32 %v496, 184
        %v520 = vadd.s32 %v496, 192
        %v521 = vadd.s32 %v496, 200
        %v522 = vadd.s32 %v496, 208
        %v523 = vadd.s32 %v496, 216
        %v524 = vadd.s32 %v496, 224
        %v525 = vadd.s32 %v496, 232
        %v526 = vadd.s32 %v496, 240
        %v527 = vadd.s32 %v496, 248
        %v528 = vstv %s494
        %v529 = vadd.s32 %v528, %v496
        %v530 = vadd.s32 %v528, %v497
        %v531 = vadd.s32 %v528, %v498
        %v532 = vadd.s32 %v528, %v499
        %v533 = vadd.s32 %v528, %v500
        %v534 = vadd.s32 %v528, %v501
        %v535 = vadd.s32 %v528, %v502
        %v536 = vadd.s32 %v528, %v503
        %v537 = vadd.s32 %v528, %v504
        %v538 = vadd.s32 %v528, %v505
        %v539 = vadd.s32 %v528, %v506
        %v540 = vadd.s32 %v528, %v507
        %v541 = vadd.s32 %v528, %v508
        %v542 = vadd.s32 %v528, %v509
        %v543 = vadd.s32 %v528, %v510
        %v544 = vadd.s32 %v528, %v511
        %v545 = vadd.s32 %v528, %v512
        %v546 = vadd.s32 %v528, %v513
        %v547 = vadd.s32 %v528, %v514
        %v548 = vadd.s32 %v528, %v515
        %v549 = vadd.s32 %v528, %v516
        %v550 = vadd.s32 %v528, %v517
        %v551 = vadd.s32 %v528, %v518
        %v552 = vadd.s32 %v528, %v519
        %v553 = vadd.s32 %v528, %v520
        %v554 = vadd.s32 %v528, %v521
        %v555 = vadd.s32 %v528, %v522
        %v556 = vadd.s32 %v528, %v523
        %v557 = vadd.s32 %v528, %v524
        %v558 = vadd.s32 %v528, %v525
        %v559 = vadd.s32 %v528, %v526
        %v560 = vadd.s32 %v528, %v527
        %vm561 = vcmp.lt.s32.totalorder %v529, 512
        %vm562 = vcmp.lt.s32.totalorder %v530, 512
        %vm563 = vcmp.lt.s32.totalorder %v531, 512
        %vm564 = vcmp.lt.s32.totalorder %v532, 512
        %vm565 = vcmp.lt.s32.totalorder %v533, 512
        %vm566 = vcmp.lt.s32.totalorder %v534, 512
        %vm567 = vcmp.lt.s32.totalorder %v535, 512
        %vm568 = vcmp.lt.s32.totalorder %v536, 512
        %vm569 = vcmp.lt.s32.totalorder %v537, 512
        %vm570 = vcmp.lt.s32.totalorder %v538, 512
        %vm571 = vcmp.lt.s32.totalorder %v539, 512
        %vm572 = vcmp.lt.s32.totalorder %v540, 512
        %vm573 = vcmp.lt.s32.totalorder %v541, 512
        %vm574 = vcmp.lt.s32.totalorder %v542, 512
        %vm575 = vcmp.lt.s32.totalorder %v543, 512
        %vm576 = vcmp.lt.s32.totalorder %v544, 512
        %vm577 = vcmp.lt.s32.totalorder %v545, 512
        %vm578 = vcmp.lt.s32.totalorder %v546, 512
        %vm579 = vcmp.lt.s32.totalorder %v547, 512
        %vm580 = vcmp.lt.s32.totalorder %v548, 512
        %vm581 = vcmp.lt.s32.totalorder %v549, 512
        %vm582 = vcmp.lt.s32.totalorder %v550, 512
        %vm583 = vcmp.lt.s32.totalorder %v551, 512
        %vm584 = vcmp.lt.s32.totalorder %v552, 512
        %vm585 = vcmp.lt.s32.totalorder %v553, 512
        %vm586 = vcmp.lt.s32.totalorder %v554, 512
        %vm587 = vcmp.lt.s32.totalorder %v555, 512
        %vm588 = vcmp.lt.s32.totalorder %v556, 512
        %vm589 = vcmp.lt.s32.totalorder %v557, 512
        %vm590 = vcmp.lt.s32.totalorder %v558, 512
        %vm591 = vcmp.lt.s32.totalorder %v559, 512
        %vm592 = vcmp.lt.s32.totalorder %v560, 512
        %v593 = vsel %vm561, %v382, 0.0
        %v594 = vsel %vm562, %v384, 0.0
        %v595 = vsel %vm563, %v387, 0.0
        %v596 = vsel %vm564, %v389, 0.0
        %v597 = vsel %vm565, %v392, 0.0
        %v598 = vsel %vm566, %v394, 0.0
        %v599 = vsel %vm567, %v397, 0.0
        %v600 = vsel %vm568, %v399, 0.0
        %v601 = vsel %vm569, %v402, 0.0
        %v602 = vsel %vm570, %v404, 0.0
        %v603 = vsel %vm571, %v407, 0.0
        %v604 = vsel %vm572, %v409, 0.0
        %v605 = vsel %vm573, %v412, 0.0
        %v606 = vsel %vm574, %v414, 0.0
        %v607 = vsel %vm575, %v417, 0.0
        %v608 = vsel %vm576, %v419, 0.0
        %v609 = vsel %vm577, %v422, 0.0
        %v610 = vsel %vm578, %v424, 0.0
        %v611 = vsel %vm579, %v427, 0.0
        %v612 = vsel %vm580, %v429, 0.0
        %v613 = vsel %vm581, %v432, 0.0
        %v614 = vsel %vm582, %v434, 0.0
        %v615 = vsel %vm583, %v437, 0.0
        %v616 = vsel %vm584, %v439, 0.0
        %v617 = vsel %vm585, %v442, 0.0
        %v618 = vsel %vm586, %v444, 0.0
        %v619 = vsel %vm587, %v447, 0.0
        %v620 = vsel %vm588, %v449, 0.0
        %v621 = vsel %vm589, %v452, 0.0
        %v622 = vsel %vm590, %v454, 0.0
        %v623 = vsel %vm591, %v457, 0.0
        %v624 = vsel %vm592, %v459, 0.0
        %v625 = vld [vmem:[#allocation2] sm:$0x1]
        %v626 = vsel %vm461, %v593, 0.0
        %v627 = vsel %vm461, %v594, 0.0
        %v628 = vadd.f32 %v626, %v627
        %v629 = vsel %vm461, %v595, 0.0
        %v630 = vadd.f32 %v628, %v629
        %v631 = vsel %vm461, %v596, 0.0
        %v632 = vadd.f32 %v630, %v631
        %v633 = vsel %vm461, %v597, 0.0
        %v634 = vadd.f32 %v632, %v633
        %v635 = vsel %vm461, %v598, 0.0
        %v636 = vadd.f32 %v634, %v635
        %v637 = vsel %vm461, %v599, 0.0
        %v638 = vadd.f32 %v636, %v637
        %v639 = vsel %vm461, %v600, 0.0
        %v640 = vadd.f32 %v638, %v639
        %v641 = vsel %vm461, %v601, 0.0
        %v642 = vadd.f32 %v640, %v641
        %v643 = vsel %vm461, %v602, 0.0
        %v644 = vadd.f32 %v642, %v643
        %v645 = vsel %vm461, %v603, 0.0
        %v646 = vadd.f32 %v644, %v645
        %v647 = vsel %vm461, %v604, 0.0
        %v648 = vadd.f32 %v646, %v647
        %v649 = vsel %vm461, %v605, 0.0
        %v650 = vadd.f32 %v648, %v649
        %v651 = vsel %vm461, %v606, 0.0
        %v652 = vadd.f32 %v650, %v651
        %v653 = vsel %vm461, %v607, 0.0
        %v654 = vadd.f32 %v652, %v653
        %v655 = vsel %vm461, %v608, 0.0
        %v656 = vadd.f32 %v654, %v655
        %v657 = vsel %vm461, %v609, 0.0
        %v658 = vadd.f32 %v656, %v657
        %v659 = vsel %vm461, %v610, 0.0
        %v660 = vadd.f32 %v658, %v659
        %v661 = vsel %vm461, %v611, 0.0
        %v662 = vadd.f32 %v660, %v661
        %v663 = vsel %vm461, %v612, 0.0
        %v664 = vadd.f32 %v662, %v663
        %v665 = vsel %vm461, %v613, 0.0
        %v666 = vadd.f32 %v664, %v665
        %v667 = vsel %vm461, %v614, 0.0
        %v668 = vadd.f32 %v666, %v667
        %v669 = vsel %vm461, %v615, 0.0
        %v670 = vadd.f32 %v668, %v669
        %v671 = vsel %vm461, %v616, 0.0
        %v672 = vadd.f32 %v670, %v671
        %v673 = vsel %vm461, %v617, 0.0
        %v674 = vadd.f32 %v672, %v673
        %v675 = vsel %vm461, %v618, 0.0
        %v676 = vadd.f32 %v674, %v675
        %v677 = vsel %vm461, %v619, 0.0
        %v678 = vadd.f32 %v676, %v677
        %v679 = vsel %vm461, %v620, 0.0
        %v680 = vadd.f32 %v678, %v679
        %v681 = vsel %vm461, %v621, 0.0
        %v682 = vadd.f32 %v680, %v681
        %v683 = vsel %vm461, %v622, 0.0
        %v684 = vadd.f32 %v682, %v683
        %v685 = vsel %vm461, %v623, 0.0
        %v686 = vadd.f32 %v684, %v685
        %v687 = vsel %vm461, %v624, 0.0
        %v688 = vadd.f32 %v686, %v687
        %v689 = vrot.slane %v688, 4
        %v690 = vadd.f32 %v688, %v689
        %v691 = vrot.slane %v690, 2
        %v692 = vadd.f32 %v690, %v691
        %v693 = vrot.slane %v692, 1
        %v694 = vadd.f32 %v692, %v693
        %v695 = vadd.f32 %v625, %v694
        %vm696 = vcmask 57344
        %697 = vst.msk [vmem:[#allocation2] sm:$0x1] %vm696, %v695
        %v698 = vld [vmem:[#allocation4] sm:$0x1]
        %v699 = vmul.f32 %v593, %v593
        %v700 = vmul.f32 %v594, %v594
        %v701 = vmul.f32 %v595, %v595
        %v702 = vmul.f32 %v596, %v596
        %v703 = vmul.f32 %v597, %v597
        %v704 = vmul.f32 %v598, %v598
        %v705 = vmul.f32 %v599, %v599
        %v706 = vmul.f32 %v600, %v600
        %v707 = vmul.f32 %v601, %v601
        %v708 = vmul.f32 %v602, %v602
        %v709 = vmul.f32 %v603, %v603
        %v710 = vmul.f32 %v604, %v604
        %v711 = vmul.f32 %v605, %v605
        %v712 = vmul.f32 %v606, %v606
        %v713 = vmul.f32 %v607, %v607
        %v714 = vmul.f32 %v608, %v608
        %v715 = vmul.f32 %v609, %v609
        %v716 = vmul.f32 %v610, %v610
        %v717 = vmul.f32 %v611, %v611
        %v718 = vmul.f32 %v612, %v612
        %v719 = vmul.f32 %v613, %v613
        %v720 = vmul.f32 %v614, %v614
        %v721 = vmul.f32 %v615, %v615
        %v722 = vmul.f32 %v616, %v616
        %v723 = vmul.f32 %v617, %v617
        %v724 = vmul.f32 %v618, %v618
        %v725 = vmul.f32 %v619, %v619
        %v726 = vmul.f32 %v620, %v620
        %v727 = vmul.f32 %v621, %v621
        %v728 = vmul.f32 %v622, %v622
        %v729 = vmul.f32 %v623, %v623
        %v730 = vmul.f32 %v624, %v624
        %v731 = vsel %vm461, %v699, 0.0
        %v732 = vsel %vm461, %v700, 0.0
        %v733 = vadd.f32 %v731, %v732
        %v734 = vsel %vm461, %v701, 0.0
        %v735 = vadd.f32 %v733, %v734
        %v736 = vsel %vm461, %v702, 0.0
        %v737 = vadd.f32 %v735, %v736
        %v738 = vsel %vm461, %v703, 0.0
        %v739 = vadd.f32 %v737, %v738
        %v740 = vsel %vm461, %v704, 0.0
        %v741 = vadd.f32 %v739, %v740
        %v742 = vsel %vm461, %v705, 0.0
        %v743 = vadd.f32 %v741, %v742
        %v744 = vsel %vm461, %v706, 0.0
        %v745 = vadd.f32 %v743, %v744
        %v746 = vsel %vm461, %v707, 0.0
        %v747 = vadd.f32 %v745, %v746
        %v748 = vsel %vm461, %v708, 0.0
        %v749 = vadd.f32 %v747, %v748
        %v750 = vsel %vm461, %v709, 0.0
        %v751 = vadd.f32 %v749, %v750
        %v752 = vsel %vm461, %v710, 0.0
        %v753 = vadd.f32 %v751, %v752
        %v754 = vsel %vm461, %v711, 0.0
        %v755 = vadd.f32 %v753, %v754
        %v756 = vsel %vm461, %v712, 0.0
        %v757 = vadd.f32 %v755, %v756
        %v758 = vsel %vm461, %v713, 0.0
        %v759 = vadd.f32 %v757, %v758
        %v760 = vsel %vm461, %v714, 0.0
        %v761 = vadd.f32 %v759, %v760
        %v762 = vsel %vm461, %v715, 0.0
        %v763 = vadd.f32 %v761, %v762
        %v764 = vsel %vm461, %v716, 0.0
        %v765 = vadd.f32 %v763, %v764
        %v766 = vsel %vm461, %v717, 0.0
        %v767 = vadd.f32 %v765, %v766
        %v768 = vsel %vm461, %v718, 0.0
        %v769 = vadd.f32 %v767, %v768
        %v770 = vsel %vm461, %v719, 0.0
        %v771 = vadd.f32 %v769, %v770
        %v772 = vsel %vm461, %v720, 0.0
        %v773 = vadd.f32 %v771, %v772
        %v774 = vsel %vm461, %v721, 0.0
        %v775 = vadd.f32 %v773, %v774
        %v776 = vsel %vm461, %v722, 0.0
        %v777 = vadd.f32 %v775, %v776
        %v778 = vsel %vm461, %v723, 0.0
        %v779 = vadd.f32 %v777, %v778
        %v780 = vsel %vm461, %v724, 0.0
        %v781 = vadd.f32 %v779, %v780
        %v782 = vsel %vm461, %v725, 0.0
        %v783 = vadd.f32 %v781, %v782
        %v784 = vsel %vm461, %v726, 0.0
        %v785 = vadd.f32 %v783, %v784
        %v786 = vsel %vm461, %v727, 0.0
        %v787 = vadd.f32 %v785, %v786
        %v788 = vsel %vm461, %v728, 0.0
        %v789 = vadd.f32 %v787, %v788
        %v790 = vsel %vm461, %v729, 0.0
        %v791 = vadd.f32 %v789, %v790
        %v792 = vsel %vm461, %v730, 0.0
        %v793 = vadd.f32 %v791, %v792
        %v794 = vrot.slane %v793, 4
        %v795 = vadd.f32 %v793, %v794
        %v796 = vrot.slane %v795, 2
        %v797 = vadd.f32 %v795, %v796
        %v798 = vrot.slane %v797, 1
        %v799 = vadd.f32 %v797, %v798
        %v800 = vadd.f32 %v698, %v799
        %801 = vst.msk [vmem:[#allocation4] sm:$0x1] %vm696, %v800
        %s802 = smul.u32 32, %s18
        %p803 = scmp.lt.s32.totalorder %s802, 63
        %s804 = scalar_select %p803, %s802, 63
        %s805 = smul.addr %s804, 8
        %s806 = scalar_lea.vmem %s2, %s805
        // Predicated region
        $region33: #{tpu_custom_call.1} parent=27 // pred_check
          %p807 = pneg %p83
        $region34: #{tpu_custom_call.1} parent=27 // pred_check_branch
          %809 = sbr.rel (%p807) target = $region36
        $region35: #{tpu_custom_call.1} parent=27 // pred_region
          %s810 = smul.u32 32, %s18
        $region36: #{tpu_custom_call.1} parent=27 // pred_fallthru
          _
        // Predicated region
        $region37: #{tpu_custom_call.1} parent=27 // pred_check
          %p811 = pneg %p104
        $region38: #{tpu_custom_call.1} parent=27 // pred_check_branch
          %813 = sbr.rel (%p811) target = $region40
        $region39: #{tpu_custom_call.1} parent=27 // pred_region
          %815 = vsyncadd [#allocation3], 0
          %s817 = sshll.u32 [#allocation2], 4
          %s818 = int_to_ptr.vmem [resolvable:$true] %s817
          %s819 = sshll.u32 %s3, 4
          %s820 = int_to_ptr.hbm [resolvable:$true] %s819
          %822 = dma.vmem_to_hbm [thread:$0]  %s818, 16, %s820, [#allocation3]
        $region40: #{tpu_custom_call.1} parent=27 // pred_fallthru
          _
        // Predicated region
        $region41: #{tpu_custom_call.1} parent=27 // pred_check
          %p823 = pneg %p125
        $region42: #{tpu_custom_call.1} parent=27 // pred_check_branch
          %825 = sbr.rel (%p823) target = $region44
        $region43: #{tpu_custom_call.1} parent=27 // pred_region
          %827 = vsyncadd [#allocation5], 0
          %s829 = sshll.u32 [#allocation4], 4
          %s830 = int_to_ptr.vmem [resolvable:$true] %s829
          %s831 = sshll.u32 %s4, 4
          %s832 = int_to_ptr.hbm [resolvable:$true] %s831
          %834 = dma.vmem_to_hbm [thread:$0]  %s830, 16, %s832, [#allocation5]
        $region44: #{tpu_custom_call.1} parent=27 // pred_fallthru
          _
        // Predicated region
        $region45: #{tpu_custom_call.1} parent=27 // pred_check
          %p835 = pneg %p104
        $region46: #{tpu_custom_call.1} parent=27 // pred_check_branch
          %837 = sbr.rel (%p835) target = $region48
        $region47: #{tpu_custom_call.1} parent=27 // pred_region
          %839 = dma.done [#allocation3], 16
        $region48: #{tpu_custom_call.1} parent=27 // pred_fallthru
          _
        // Predicated region
        $region49: #{tpu_custom_call.1} parent=27 // pred_check
          %p840 = pneg %p125
        $region50: #{tpu_custom_call.1} parent=27 // pred_check_branch
          %842 = sbr.rel (%p840) target = $region52
        $region51: #{tpu_custom_call.1} parent=27 // pred_region
          %844 = dma.done [#allocation5], 16
        $region52: #{tpu_custom_call.1} parent=27 // pred_fallthru
          _
      $region28: #{tpu_custom_call.1} parent=5 // pred_fallthru
        _
      %p845 = scmp.le.s32.totalorder 2, %s13
      // Predicated region
      $region53: #{tpu_custom_call.1} parent=5 // pred_check
        %p846 = pneg %p845
      $region54: #{tpu_custom_call.1} parent=5 // pred_check_branch
        %848 = sbr.rel (%p846) target = $region56
      $region55: #{tpu_custom_call.1} parent=5 // pred_region
        %s849 = ssub.s32 %s13, 2
        // Predicated region
        $region57: #{tpu_custom_call.1} parent=55 // pred_check
          %p850 = pneg %p89
        $region58: #{tpu_custom_call.1} parent=55 // pred_check_branch
          %852 = sbr.rel (%p850) target = $region60
        $region59: #{tpu_custom_call.1} parent=55 // pred_region
          %s853 = smul.u32 32, %s19
          %p854 = scmp.lt.s32.totalorder %s853, 63
          %s855 = scalar_select %p854, %s853, 63
          %s856 = smul.addr %s855, 8
          %s857 = scalar_lea.vmem %s2, %s856
        $region60: #{tpu_custom_call.1} parent=55 // pred_fallthru
          _
      $region56: #{tpu_custom_call.1} parent=5 // pred_fallthru
        _
    $region6: #{tpu_custom_call.1} parent=1 // loop_footer
      %s17 = sadd.s32 1, %s13
    $region7: #{tpu_custom_call.1} parent=1 // loop_footer_branch
      %12 = sbr.rel target = $region3
    $region8: #{tpu_custom_call.1} parent=1 // loop_exit
      _
    %858 = vsyncpa [#allocation3], 1
    %s859 = scalar_lea.sflag [#allocation3], 1
    %860 = vsyncpa %s859, 1
    %861 = vsyncpa [#allocation5], 1

</llo_original>
